<compile_context>
chip_gen: v7x
topology: tpu7x:2x2x1
jax: 0.10.0
libtpu: 0.0.40
codegen_flags: <defaults>
</compile_context>

<pallas_src>
import functools

import jax
import jax.numpy as jnp
from jax.experimental import pallas as pl
from jax.experimental.pallas import tpu as pltpu


def _concat_pool_kernel(x_ref, o_ref, *, inv_hw):
    # x_ref: (NB, TC, HW) input block.  o_ref: (NB, 2, TC) output block.
    xf = x_ref[...].astype(jnp.float32)            # one upcast shared by both reductions
    mx = jnp.max(xf, axis=-1)                      # (NB, TC)
    sm = jnp.sum(xf, axis=-1)                      # (NB, TC)
    o_ref[:, 0, :] = mx.astype(o_ref.dtype)                 # max-pool channels
    o_ref[:, 1, :] = (sm * inv_hw).astype(o_ref.dtype)      # avg-pool channels


def _round_up(v, m):
    return ((v + m - 1) // m) * m


def _choose_tiles(n, c, hw_phys, target_elems):
    """Pick (NB, TC): samples and channels per block, ~target_elems elements per block."""
    per_sample = c * hw_phys
    if per_sample <= target_elems:
        # Whole sample(s) per block; batch samples up to the target block size.
        nb = 1
        for d in range(n, 0, -1):
            if n % d == 0 and d * per_sample <= target_elems:
                nb = d
                break
        return nb, c
    # One sample per block; tile channels.  TC must be a multiple of 128 (keeps
    # the lane-dense output block legal) or fall back to the full channel dim.
    cands = [t for t in range(128, c + 1, 128) if c % t == 0]
    fitting = [t for t in cands if t * hw_phys <= target_elems]
    if fitting:
        return 1, max(fitting)
    if cands:
        return 1, min(cands)
    # TODO(synk): C not tileable by 128 with very large C*HW would need an extra
    # HW reduction grid axis ("arbitrary", scratch accumulator + pl.when finalize).
    return 1, c


def adaptive_concat_pool2d(x):
    """x: (N, C, H, W) -> (N, 2*C, 1, 1) = concat([max_pool, avg_pool], axis=1)."""
    N, C, H, W = x.shape
    HW = H * W
    x3 = x.reshape(N, C, HW)
    itemsize = jnp.dtype(x.dtype).itemsize

    # Physical (VMEM-tile padded) sizes, used for block sizing only.
    hw_phys = _round_up(HW, 128)
    target_elems = 512 * 1024                      # ~2 MiB of f32 per input block
    NB, TC = _choose_tiles(N, C, hw_phys, target_elems)
    grid = (N // NB, C // TC)

    # VMEM budget: double-buffered input block + f32 upcast temporaries + slack.
    block_elems = NB * _round_up(TC, 8) * hw_phys
    need = 2 * block_elems * itemsize + 2 * block_elems * 4 + (2 << 20)
    vmem_limit = int(min(max(need, 32 << 20), 64 << 20))

    cost = pl.CostEstimate(
        flops=2 * N * C * HW,                      # one max + one add per element
        transcendentals=0,
        bytes_accessed=N * C * HW * itemsize + N * 2 * C * itemsize,
    )

    kernel = functools.partial(_concat_pool_kernel, inv_hw=1.0 / float(HW))

    out = pl.pallas_call(
        kernel,
        out_shape=jax.ShapeDtypeStruct((N, 2, C), x.dtype),
        grid_spec=pltpu.PrefetchScalarGridSpec(
            num_scalar_prefetch=0,
            grid=grid,
            in_specs=[pl.BlockSpec((NB, TC, HW), lambda nb, c: (nb, c, 0))],
            out_specs=pl.BlockSpec((NB, 2, TC), lambda nb, c: (nb, 0, c)),
        ),
        compiler_params=pltpu.CompilerParams(
            dimension_semantics=("parallel", "parallel"),
            vmem_limit_bytes=vmem_limit,
        ),
        cost_estimate=cost,
    )(x3)

    # (N, 2, C) -> (N, 2C, 1, 1): [max_0..max_{C-1}, avg_0..avg_{C-1}] per sample.
    return out.reshape(N, 2 * C, 1, 1)


def _reference(x):
    mx = jnp.max(x, axis=(2, 3), keepdims=True)
    av = jnp.mean(x, axis=(2, 3), keepdims=True)
    return jnp.concatenate([mx, av], axis=1)


if __name__ == "__main__":
    # Primary small case (matches module usage): N=2, C=4, 16x16 spatial.
    x = jax.random.normal(jax.random.PRNGKey(0), (2, 4, 16, 16), dtype=jnp.float32)
    y = adaptive_concat_pool2d(x)
    jax.block_until_ready(y)
    assert y.shape == (2, 8, 1, 1)
    assert jnp.allclose(y, _reference(x), atol=1e-5, rtol=1e-5)

    # Non-128-multiple spatial size (7x7 ResNet-head case) exercises the masked lane reduce.
    x2 = jax.random.normal(jax.random.PRNGKey(1), (3, 4, 7, 7), dtype=jnp.float32)
    y2 = adaptive_concat_pool2d(x2)
    jax.block_until_ready(y2)
    assert y2.shape == (3, 8, 1, 1)
    assert jnp.allclose(y2, _reference(x2), atol=1e-5, rtol=1e-5)

    # Larger channel count triggers the channel-tiling grid axis (TC=128, grid=(1, 2)).
    xc = jax.random.normal(jax.random.PRNGKey(2), (1, 256, 48, 48), dtype=jnp.float32)
    yc = adaptive_concat_pool2d(xc)
    jax.block_until_ready(yc)
    assert yc.shape == (1, 512, 1, 1)
    assert jnp.allclose(yc, _reference(xc), atol=1e-4, rtol=1e-5)

    print("KERNEL_OK")
</pallas_src>

<mosaic_0001>
module attributes {stable_mosaic.version = 11 : i64} {
  func.func @_concat_pool_kernel(%arg0: i32, %arg1: i32, %arg2: memref<2x4x256xf32, #tpu.memory_space<vmem>>, %arg3: memref<2x2x4xf32, #tpu.memory_space<vmem>>) attributes {dimension_semantics = [#tpu.dimension_semantics<parallel>, #tpu.dimension_semantics<parallel>], iteration_bounds = array<i64: 1, 1>, scalar_prefetch = 0 : i64, scratch_operands = 0 : i64, tpu.core_type = #tpu.core_type<tc>, window_params = [{transform_indices = @transform_0, window_bounds = array<i64: 2, 4, 256>}, {transform_indices = @transform_1, window_bounds = array<i64: 2, 2, 4>}]} {
    %c0 = arith.constant 0 : index
    %c0_0 = arith.constant 0 : index
    %c0_1 = arith.constant 0 : index
    %0 = vector.load %arg2[%c0, %c0_0, %c0_1] : memref<2x4x256xf32, #tpu.memory_space<vmem>>, vector<2x4x256xf32>
    %cst = arith.constant dense<0xFF800000> : vector<2x4xf32>
    %1 = vector.multi_reduction <maximumf>, %0, %cst [2] : vector<2x4x256xf32> to vector<2x4xf32>
    %cst_2 = arith.constant dense<0.000000e+00> : vector<2x4xf32>
    %2 = vector.multi_reduction <add>, %0, %cst_2 [2] : vector<2x4x256xf32> to vector<2x4xf32>
    %c0_3 = arith.constant 0 : index
    %c0_4 = arith.constant 0 : index
    %c0_5 = arith.constant 0 : index
    %3 = vector.load %arg3[%c0_3, %c0_4, %c0_5] : memref<2x2x4xf32, #tpu.memory_space<vmem>>, vector<2x1x4xf32>
    %4 = vector.shape_cast %3 : vector<2x1x4xf32> to vector<2x4xf32>
    %5 = vector.shape_cast %1 : vector<2x4xf32> to vector<2x1x4xf32>
    tpu.vector_store %arg3[%c0_3, %c0_4, %c0_5], %5 {strides = array<i32>} : memref<2x2x4xf32, #tpu.memory_space<vmem>>, vector<2x1x4xf32>,
    %cst_6 = arith.constant 3.906250e-03 : f32
    %6 = vector.broadcast %cst_6 : f32 to vector<2x4xf32>
    %7 = arith.mulf %2, %6 : vector<2x4xf32>
    %c0_7 = arith.constant 0 : index
    %c1 = arith.constant 1 : index
    %c0_8 = arith.constant 0 : index
    %8 = vector.load %arg3[%c0_7, %c1, %c0_8] : memref<2x2x4xf32, #tpu.memory_space<vmem>>, vector<2x1x4xf32>
    %9 = vector.shape_cast %8 : vector<2x1x4xf32> to vector<2x4xf32>
    %10 = vector.shape_cast %7 : vector<2x4xf32> to vector<2x1x4xf32>
    tpu.vector_store %arg3[%c0_7, %c1, %c0_8], %10 {strides = array<i32>} : memref<2x2x4xf32, #tpu.memory_space<vmem>>, vector<2x1x4xf32>,
    return
  }
  func.func @transform_0(%arg0: i32, %arg1: i32) -> (i32, i32, i32) {
    %c0_i32 = arith.constant 0 : i32
    %c0_i32_0 = arith.constant 0 : i32
    return %arg0, %arg1, %c0_i32 : i32, i32, i32
  }
  func.func @transform_1(%arg0: i32, %arg1: i32) -> (i32, i32, i32) {
    %c0_i32 = arith.constant 0 : i32
    %c0_i32_0 = arith.constant 0 : i32
    return %arg0, %c0_i32, %arg1 : i32, i32, i32
  }
}

</mosaic_0001>

<llo_original>
// kernel: tpu_custom_call.1
$region0: #{tpu_custom_call.1}
  #allocation0 [shape = 'u32[]', space=smem, size = 0x4, offset = 0x4, fixed_abs, tag = 'smem constant byte address 0x4 - core index']
  #allocation1 [shape = 'u32[144,128]{1,0:T(1,128)}', space=vmem, size = 0x12000, scoped, tag = 'internal scratch']
  %s0 = inlined_call_operand.hbm [shape: f32[2,4,256], index: 0, kind: input, shape index: {}]
  %s1 = inlined_call_operand.hbm [shape: f32[2,2,4], index: 1, kind: output, shape index: {}]
  %s2 = sld [smem:[#allocation0]]
  $region18: #{tpu_custom_call.1} parent=0
    _
  %s4 = ssub.s32 1, %s2
  %s5 = scalar_select 0, %s4, %s2
  $region1: #{tpu_custom_call.1} parent=0
    #allocation2 [shape = 'u8[8192]{0}', space=vmem, size = 0x2000, scoped, tag = 'input window, operand 0, single buffered']
    #allocation3 [shape = 's32[1]{0}', space=sflag, size = 0x4, scoped, tag = 'scoped memory for tpu_custom_call.1']
    #allocation4 [shape = 's32[1]{0}', space=sflag, size = 0x4, scoped, tag = 'scoped memory for tpu_custom_call.1']
    #allocation5 [shape = 'u8[2048]{0}', space=vmem, size = 0x800, scoped, tag = 'output window, operand 0, single buffered']
    %6 = vsyncpa [#allocation3], 0
    %7 = vsyncpa [#allocation4], 0
    // Predicated region
    $region2: #{tpu_custom_call.1} parent=1 // pred_check
      _
    $region3: #{tpu_custom_call.1} parent=1 // pred_check_branch
      %9 = sbr.rel (0) target = $region5
    $region4: #{tpu_custom_call.1} parent=1 // pred_region
      %s11 = ssub.s32 256, 256
      %12 = vsyncadd [#allocation3], %s11
      %s13 = sshll.u32 [#allocation2], 4
      %s14 = int_to_ptr.vmem [resolvable:$true] %s13
      %19 = dma.hbm_to_vmem [thread:$0]  %s0, 256, %s14, [#allocation3], 128, 128, 8
    $region5: #{tpu_custom_call.1} parent=1 // pred_fallthru
      _
    // Predicated region
    $region6: #{tpu_custom_call.1} parent=1 // pred_check
      _
    $region7: #{tpu_custom_call.1} parent=1 // pred_check_branch
      %21 = sbr.rel (0) target = $region9
    $region8: #{tpu_custom_call.1} parent=1 // pred_region
      %22 = dma.done [#allocation3], 256
    $region9: #{tpu_custom_call.1} parent=1 // pred_fallthru
      _
    %v23 = vld [vmem:[#allocation2] sm:$0xff]
    %v24 = vld [vmem:[#allocation2 + $0x8] sm:$0xff]
    %v27 = vcombine.high %v23, %v23
    %v28 = vcombine.high %v24, %v24
    %vm31 = vcmask 1043456
    %v32 = vsel %vm31, %v23, -inf
    %v33 = vsel %vm31, %v27, -inf
    %v34 = vmax.f32 %v32, %v33
    %35 = vmax.xlane.f32.xlu0 %v34
    %v36 = vpop.xlane.xlu0 %35
    %v37 = vsel %vm31, %v24, -inf
    %v38 = vsel %vm31, %v28, -inf
    %v39 = vmax.f32 %v37, %v38
    %40 = vmax.xlane.f32.xlu0 %v39
    %v41 = vpop.xlane.xlu0 %40
    %v42 = vsel %vm31, %v23, 0.0
    %v43 = vsel %vm31, %v27, 0.0
    %v44 = vadd.f32 %v42, %v43
    %45 = vadd.xlane.f32.xlu0 %v44
    %v46 = vpop.xlane.xlu0 %45
    %v47 = vsel %vm31, %v24, 0.0
    %v48 = vsel %vm31, %v28, 0.0
    %v49 = vadd.f32 %v47, %v48
    %50 = vadd.xlane.f32.xlu0 %v49
    %v51 = vpop.xlane.xlu0 %50
    %v54 = vlaneseq
    %v55 = vand.u32 %v54, 127
    %v56 = vlaneseq
    %v57 = vshrl.u32 %v56, 7
    %v58 = vsub.s32 %v55, %v57
    %v59 = vrot.slane %v36, %v58
    %v60 = vlaneseq
    %v61 = vshrl.u32 %v60, 7
    %v62 = vsub.s32 %v55, %v61
    %v63 = vrot.slane %v41, %v62
    %vm66 = vcmask 24576
    %67 = vst.msk [vmem:[#allocation5] sm:$0x1] %vm66, %v59
    %68 = vst.msk [vmem:[#allocation5 + $0x2] sm:$0x1] %vm66, %v63
    %v69 = vmul.f32 %v46, 0.00390625
    %v70 = vmul.f32 %v51, 0.00390625
    %v73 = vlaneseq
    %v74 = vshrl.u32 %v73, 7
    %v75 = vsub.s32 %v55, %v74
    %v76 = vrot.slane %v69, %v75
    %v77 = vlaneseq
    %v78 = vshrl.u32 %v77, 7
    %v79 = vsub.s32 %v55, %v78
    %v80 = vrot.slane %v70, %v79
    %83 = vst.msk [vmem:[#allocation5 + $0x1] sm:$0x1] %vm66, %v76
    %84 = vst.msk [vmem:[#allocation5 + $0x3] sm:$0x1] %vm66, %v80
    // Predicated region
    $region10: #{tpu_custom_call.1} parent=1 // pred_check
      _
    $region11: #{tpu_custom_call.1} parent=1 // pred_check_branch
      %86 = sbr.rel (0) target = $region13
    $region12: #{tpu_custom_call.1} parent=1 // pred_region
      %s88 = ssub.s32 64, 64
      %89 = vsyncadd [#allocation4], %s88
      %s90 = sshll.u32 [#allocation5], 4
      %s91 = int_to_ptr.vmem [resolvable:$true] %s90
      %96 = dma.vmem_to_hbm [thread:$0]  %s91, 64, %s1, [#allocation4], 32, 32, 2
    $region13: #{tpu_custom_call.1} parent=1 // pred_fallthru
      _
    // Predicated region
    $region14: #{tpu_custom_call.1} parent=1 // pred_check
      _
    $region15: #{tpu_custom_call.1} parent=1 // pred_check_branch
      %98 = sbr.rel (0) target = $region17
    $region16: #{tpu_custom_call.1} parent=1 // pred_region
      %99 = dma.done [#allocation4], 64
    $region17: #{tpu_custom_call.1} parent=1 // pred_fallthru
      _
    %100 = vsyncpa [#allocation3], 1
    %101 = vsyncpa [#allocation4], 1

</llo_original>
